<compile_context>
chip_gen: v5e
topology: v5e:2x2
jax: 0.10.0
libtpu: 0.0.40
codegen_flags: <defaults>
</compile_context>

<pallas_src>
import math

import jax
import jax.numpy as jnp
from jax import lax
from jax.experimental import pallas as pl
from jax.experimental.pallas import tpu as pltpu

# ---- model hyper-parameters (globals q, d, q_n, n in the reference code) ----
Q = 16                       # number of input features
D = 8                        # latent dim
HSIZE = int(1.5 * Q)         # 24
Q_N = (4, 4, 4, 4)           # categorical group sizes; sum(Q_N) == Q
BN_EPS = 1e-5
BATCH = 8

assert sum(Q_N) == Q
assert HSIZE % 8 == 0 and Q % 8 == 0 and (2 * D) % 8 == 0

# Layer layout of the packed parameter slabs: (name, fan_in, fan_out).
# Every transposed block is zero-padded to (HSIZE, HSIZE) so the activation
# chain can stay (HSIZE, tb) end-to-end with no lane slicing of the weights.
# BN folds: bn1 -> en3 (input side), bn2 -> de2 (input side),
#           bn3 -> de3 (input side), bnfinal -> de3 (output side).
_LAYERS = (
    ("en1",   Q,     HSIZE),
    ("en2",   HSIZE, HSIZE),
    ("en3",   HSIZE, HSIZE),
    ("mustd", HSIZE, 2 * D),   # fused en_mu | en_std
    ("de1",   D,     HSIZE),
    ("de2",   HSIZE, HSIZE),
    ("de22",  HSIZE, HSIZE),
    ("de3",   HSIZE, Q),
)
N_LAYERS = len(_LAYERS)       # 8
W_ROWS = N_LAYERS * HSIZE     # 192 sublanes in the packed slabs
OUT_W = Q + 2 * D             # packed output rows: recon | mu | logvar = 32


def _vae_kernel(x_ref, w_ref, b_ref, out_ref):
    """Fused VAE forward for one batch tile.

    Layout: batch on the lane axis.  x_ref (HSIZE, tb) with rows >= Q zero,
    w_ref (W_ROWS, HSIZE), b_ref (W_ROWS, 1), out_ref (OUT_W, tb).
    """
    f32 = jnp.float32

    def layer(h, idx):
        r0 = idx * HSIZE
        w = w_ref[r0:r0 + HSIZE, :]        # (HSIZE, HSIZE); padded rows/cols zero
        b = b_ref[r0:r0 + HSIZE, :]        # (HSIZE, 1);     padded rows zero
        return jnp.dot(w, h, preferred_element_type=f32) + b

    h = x_ref[...]                          # (HSIZE, tb), rows [Q, HSIZE) are zero

    # ------------------------- encoder -------------------------
    h = jnp.tanh(layer(h, 0))               # en1 + tanh (dropout1 = identity, eval)
    h = jnp.tanh(layer(h, 1))               # en2 + tanh (bn1 folded into en3)
    h = jnp.tanh(layer(h, 2))               # en3 + tanh
    y = layer(h, 3)                         # fused en_mu|en_std: rows [0,D)=mu,
                                            # [D,2D)=logvar, [2D,HSIZE)=0

    # --------------------- reparam (eval) ----------------------
    # z = mu; the de1 weight block only has non-zero columns [0, D), so the
    # full y can be fed straight in (logvar / padded rows contribute nothing).

    # ------------------------- decoder -------------------------
    h = jnp.tanh(layer(y, 4))               # de1 + tanh (bn2 folded into de2)
    h = jnp.tanh(layer(h, 5))               # de2 + tanh (dropout2 = identity, eval)
    h = jnp.tanh(layer(h, 6))               # de22 + tanh (bn3 folded into de3)
    logits = layer(h, 7)                    # de3 (+ bn3/bnfinal folds); rows [0,Q) valid

    # ------------- grouped softmax over sublane segments --------------
    # Groups are contiguous runs of rows (static offsets), so each group is a
    # small sublane slab with the batch dense on the lanes: per-group max for
    # stability, one exp, sublane sum, exact normalization, direct store.
    off = 0
    for qi in Q_N:                          # static, unrolled (len(Q_N) tiny)
        seg = logits[off:off + qi, :]                     # (qi, tb)
        m = jnp.max(seg, axis=0, keepdims=True)           # (1, tb)
        e = jnp.exp(seg - m)
        s = jnp.sum(e, axis=0, keepdims=True)             # (1, tb)
        out_ref[off:off + qi, :] = e / s                  # exact normalization
        off += qi

    # mu | logvar already contiguous in y rows [0, 2D): one aligned sub-store.
    out_ref[Q:Q + 2 * D, :] = y[0:2 * D, :]


# ----------------------------- parameters -----------------------------------

def init_raw_params(key):
    """Raw (unfolded) parameters matching nn.Linear / nn.BatchNorm1d defaults."""
    def linear_init(k, fan_in, fan_out):
        kw, kb = jax.random.split(k)
        bound = 1.0 / math.sqrt(fan_in)
        w = jax.random.uniform(kw, (fan_in, fan_out), jnp.float32, -bound, bound)
        b = jax.random.uniform(kb, (fan_out,), jnp.float32, -bound, bound)
        return w, b

    keys = jax.random.split(key, 9)
    p = {}
    p["w_en1"], p["b_en1"] = linear_init(keys[0], Q, HSIZE)
    p["w_en2"], p["b_en2"] = linear_init(keys[1], HSIZE, HSIZE)
    p["w_en3"], p["b_en3"] = linear_init(keys[2], HSIZE, HSIZE)
    p["w_mu"], p["b_mu"] = linear_init(keys[3], HSIZE, D)
    p["w_std"], p["b_std"] = linear_init(keys[4], HSIZE, D)
    p["w_de1"], p["b_de1"] = linear_init(keys[5], D, HSIZE)
    p["w_de2"], p["b_de2"] = linear_init(keys[6], HSIZE, HSIZE)
    p["w_de22"], p["b_de22"] = linear_init(keys[7], HSIZE, HSIZE)
    p["w_de3"], p["b_de3"] = linear_init(keys[8], HSIZE, Q)

    def bn_fresh(nfeat):  # (gamma, beta, running_mean, running_var)
        return (jnp.ones((nfeat,), jnp.float32), jnp.zeros((nfeat,), jnp.float32),
                jnp.zeros((nfeat,), jnp.float32), jnp.ones((nfeat,), jnp.float32))

    p["bn1"] = bn_fresh(HSIZE)
    p["bn2"] = bn_fresh(HSIZE)
    p["bn3"] = bn_fresh(HSIZE)
    p["bnfinal"] = bn_fresh(Q)
    return p


def pack_params(p):
    """Fold BN into the Linears, fuse mu/std, transpose and pack into two slabs.

    Returns:
      w_slab: (W_ROWS, HSIZE)  -- stacked (fan_out, fan_in) blocks, zero-padded
                                   to (HSIZE, HSIZE) each.
      b_slab: (W_ROWS, 1)      -- stacked per-layer bias columns, zero-padded.
    """
    def bn_affine(bn):
        gamma, beta, mean, var = bn
        s = gamma / jnp.sqrt(var + BN_EPS)
        t = beta - mean * s
        return s, t

    def fold_pre(bn, w, b):      # BN applied to the INPUT of Linear(w, b)
        s, t = bn_affine(bn)
        return s[:, None] * w, b + t @ w

    def fold_post(w, b, bn):     # BN applied to the OUTPUT of Linear(w, b)
        s, t = bn_affine(bn)
        return w * s[None, :], b * s + t

    w_en3, b_en3 = fold_pre(p["bn1"], p["w_en3"], p["b_en3"])
    w_de2, b_de2 = fold_pre(p["bn2"], p["w_de2"], p["b_de2"])
    w_de3, b_de3 = fold_pre(p["bn3"], p["w_de3"], p["b_de3"])
    w_de3, b_de3 = fold_post(w_de3, b_de3, p["bnfinal"])
    w_mustd = jnp.concatenate([p["w_mu"], p["w_std"]], axis=1)
    b_mustd = jnp.concatenate([p["b_mu"], p["b_std"]], axis=0)

    folded = {
        "en1": (p["w_en1"], p["b_en1"]), "en2": (p["w_en2"], p["b_en2"]),
        "en3": (w_en3, b_en3), "mustd": (w_mustd, b_mustd),
        "de1": (p["w_de1"], p["b_de1"]), "de2": (w_de2, b_de2),
        "de22": (p["w_de22"], p["b_de22"]), "de3": (w_de3, b_de3),
    }

    w_blocks, b_blocks = [], []
    for name, fi, fo in _LAYERS:
        w, b = folded[name]
        assert w.shape == (fi, fo) and b.shape == (fo,)
        wt = w.T                                                    # (fo, fi)
        w_blocks.append(jnp.pad(wt, ((0, HSIZE - fo), (0, HSIZE - fi))))
        b_blocks.append(jnp.pad(b, (0, HSIZE - fo))[:, None])      # (HSIZE, 1)
    w_slab = jnp.concatenate(w_blocks, axis=0).astype(jnp.float32)  # (192, 24)
    b_slab = jnp.concatenate(b_blocks, axis=0).astype(jnp.float32)  # (192, 1)
    return w_slab, b_slab


# ------------------------------ wrapper --------------------------------------

def _round_up(x, m):
    return -(-x // m) * m


def _batch_tiling(B):
    """Pick (B_pad, tb) for the lane (batch) axis.

    - always a multiple of 128 (lane-dense vregs, whole v5e MXU passes)
    - 256-aligned tiles when >= 256 (v6e/v7x 2x256^2 MXU)
    - >= 2 grid steps once B > 128 so ("parallel",) spreads work over v7x's
      two TensorCores; capped at 512 (bigger buys nothing, VMEM irrelevant).
    """
    if B <= 128:
        return 128, 128
    if B <= 256:
        return _round_up(B, 128), 128
    tb = min(512, _round_up(-(-B // 2), 256))
    return _round_up(B, tb), tb


def _vae_forward(x, w_slab, b_slab):
    B = x.shape[0]
    B_pad, tb = _batch_tiling(B)
    grid = (B_pad // tb,)

    # Layout plumbing: batch onto the lane axis, features padded Q -> HSIZE so
    # the kernel's activation chain is uniformly (HSIZE, tb).
    xt = jnp.pad(x.astype(jnp.float32),
                 ((0, B_pad - B), (0, HSIZE - Q))).T          # (HSIZE, B_pad)

    mm_flops = 2 * N_LAYERS * HSIZE * HSIZE                    # padded, per sample
    cost = pl.CostEstimate(
        flops=B_pad * mm_flops,
        transcendentals=B_pad * (6 * HSIZE + Q),
        bytes_accessed=4 * (HSIZE * B_pad + W_ROWS * HSIZE + W_ROWS
                            + OUT_W * B_pad),
    )

    out = pl.pallas_call(
        _vae_kernel,
        out_shape=jax.ShapeDtypeStruct((OUT_W, B_pad), jnp.float32),
        grid_spec=pltpu.PrefetchScalarGridSpec(
            num_scalar_prefetch=0,
            grid=grid,
            in_specs=[
                pl.BlockSpec((HSIZE, tb), lambda i: (0, i)),
                # Constant index_map -> Pallas skips re-DMA of these after the
                # first step; slabs total ~20 KiB so buffering is irrelevant.
                pl.BlockSpec((W_ROWS, HSIZE), lambda i: (0, 0)),
                pl.BlockSpec((W_ROWS, 1), lambda i: (0, 0)),
            ],
            out_specs=pl.BlockSpec((OUT_W, tb), lambda i: (0, i)),
        ),
        compiler_params=pltpu.CompilerParams(
            dimension_semantics=("parallel",)),
        cost_estimate=cost,
    )(xt, w_slab, b_slab)

    recon = out[:Q, :B].T
    mu = out[Q:Q + D, :B].T
    logvar = out[Q + D:Q + 2 * D, :B].T
    return recon, mu, logvar


vae_forward = jax.jit(_vae_forward)


# --------------------------- pure-JAX reference -------------------------------

def reference_forward(x, p):
    """Eval-mode forward identical to the PyTorch module (dropout=id, reparam=mu)."""
    hp = lax.Precision.HIGHEST
    lin = lambda h, w, b: jnp.dot(h, w, precision=hp) + b

    def bn(h, gamma, beta, mean, var):
        return (h - mean) / jnp.sqrt(var + BN_EPS) * gamma + beta

    h = jnp.tanh(lin(x, p["w_en1"], p["b_en1"]))
    h = jnp.tanh(lin(h, p["w_en2"], p["b_en2"]))
    h = bn(h, *p["bn1"])
    h = jnp.tanh(lin(h, p["w_en3"], p["b_en3"]))
    mu = lin(h, p["w_mu"], p["b_mu"])
    logvar = lin(h, p["w_std"], p["b_std"])
    z = mu
    h = jnp.tanh(lin(z, p["w_de1"], p["b_de1"]))
    h = bn(h, *p["bn2"])
    h = jnp.tanh(lin(h, p["w_de2"], p["b_de2"]))
    h = jnp.tanh(lin(h, p["w_de22"], p["b_de22"]))
    h = bn(h, *p["bn3"])
    h = lin(h, p["w_de3"], p["b_de3"])
    h = bn(h, *p["bnfinal"])
    outs, start = [], 0
    for qi in Q_N:
        outs.append(jax.nn.softmax(h[:, start:start + qi], axis=1))
        start += qi
    return jnp.concatenate(outs, axis=1), mu, logvar


if __name__ == "__main__":
    key = jax.random.PRNGKey(0)
    k_x, k_p = jax.random.split(key)
    # x plays the role of x.view(-1, q) in the torch forward.
    x = jax.random.uniform(k_x, (BATCH, Q), jnp.float32)
    raw = init_raw_params(k_p)
    w_slab, b_slab = pack_params(raw)

    recon, mu, logvar = vae_forward(x, w_slab, b_slab)
    jax.block_until_ready((recon, mu, logvar))

    assert recon.shape == (BATCH, Q)
    assert mu.shape == (BATCH, D)
    assert logvar.shape == (BATCH, D)

    # each softmax group must sum to ~1 per row (exact normalization now)
    start = 0
    for qi in Q_N:
        s = jnp.sum(recon[:, start:start + qi], axis=1)
        assert jnp.allclose(s, 1.0, atol=1e-4), s
        start += qi

    # compare against the unfolded pure-JAX eval-mode reference
    ref_recon, ref_mu, ref_logvar = reference_forward(x, raw)
    mad = lambda a, b: float(jnp.max(jnp.abs(a - b)))
    assert mad(mu, ref_mu) < 2e-3, mad(mu, ref_mu)
    assert mad(logvar, ref_logvar) < 2e-3, mad(logvar, ref_logvar)
    assert mad(recon, ref_recon) < 1e-2, mad(recon, ref_recon)
    assert bool(jnp.all(jnp.isfinite(recon)))

    print("KERNEL_OK")
</pallas_src>

<mosaic_0001>
module attributes {stable_mosaic.version = 11 : i64} {
  func.func @_vae_kernel(%arg0: i32, %arg1: memref<24x128xf32, #tpu.memory_space<vmem>>, %arg2: memref<192x24xf32, #tpu.memory_space<vmem>>, %arg3: memref<192x1xf32, #tpu.memory_space<vmem>>, %arg4: memref<32x128xf32, #tpu.memory_space<vmem>>) attributes {dimension_semantics = [#tpu.dimension_semantics<parallel>], iteration_bounds = array<i64: 1>, scalar_prefetch = 0 : i64, scratch_operands = 0 : i64, tpu.core_type = #tpu.core_type<tc>, window_params = [{transform_indices = @transform_0, window_bounds = array<i64: 24, 128>}, {pipeline_mode = #tpu.pipeline_mode<synchronous>, transform_indices = @transform_1, window_bounds = array<i64: 192, 24>}, {pipeline_mode = #tpu.pipeline_mode<synchronous>, transform_indices = @transform_2, window_bounds = array<i64: 192, 1>}, {transform_indices = @transform_3, window_bounds = array<i64: 32, 128>}]} {
    %c0 = arith.constant 0 : index
    %c0_0 = arith.constant 0 : index
    %0 = vector.load %arg1[%c0, %c0_0] : memref<24x128xf32, #tpu.memory_space<vmem>>, vector<24x128xf32>
    %c0_1 = arith.constant 0 : index
    %c0_2 = arith.constant 0 : index
    %1 = vector.load %arg2[%c0_1, %c0_2] : memref<192x24xf32, #tpu.memory_space<vmem>>, vector<24x24xf32>
    %c0_3 = arith.constant 0 : index
    %c0_4 = arith.constant 0 : index
    %2 = vector.load %arg3[%c0_3, %c0_4] : memref<192x1xf32, #tpu.memory_space<vmem>>, vector<24x1xf32>
    %cst = arith.constant dense<0.000000e+00> : vector<24x128xf32>
    %3 = tpu.matmul %1, %0, %cst {dimension_numbers = #tpu.dot_dimension_numbers<[1], [0], [0], [1], [0, 0, 1, 1], [], []>} : vector<24x24xf32>, vector<24x128xf32>, vector<24x128xf32> -> vector<24x128xf32>
    %4 = vector.broadcast %2 : vector<24x1xf32> to vector<24x128xf32>
    %5 = arith.addf %3, %4 : vector<24x128xf32>
    %6 = math.tanh %5 : vector<24x128xf32>
    %c24 = arith.constant 24 : index
    %c0_5 = arith.constant 0 : index
    %7 = vector.load %arg2[%c24, %c0_5] : memref<192x24xf32, #tpu.memory_space<vmem>>, vector<24x24xf32>
    %c24_6 = arith.constant 24 : index
    %c0_7 = arith.constant 0 : index
    %8 = vector.load %arg3[%c24_6, %c0_7] : memref<192x1xf32, #tpu.memory_space<vmem>>, vector<24x1xf32>
    %cst_8 = arith.constant dense<0.000000e+00> : vector<24x128xf32>
    %9 = tpu.matmul %7, %6, %cst_8 {dimension_numbers = #tpu.dot_dimension_numbers<[1], [0], [0], [1], [0, 0, 1, 1], [], []>} : vector<24x24xf32>, vector<24x128xf32>, vector<24x128xf32> -> vector<24x128xf32>
    %10 = vector.broadcast %8 : vector<24x1xf32> to vector<24x128xf32>
    %11 = arith.addf %9, %10 : vector<24x128xf32>
    %12 = math.tanh %11 : vector<24x128xf32>
    %c48 = arith.constant 48 : index
    %c0_9 = arith.constant 0 : index
    %13 = vector.load %arg2[%c48, %c0_9] : memref<192x24xf32, #tpu.memory_space<vmem>>, vector<24x24xf32>
    %c48_10 = arith.constant 48 : index
    %c0_11 = arith.constant 0 : index
    %14 = vector.load %arg3[%c48_10, %c0_11] : memref<192x1xf32, #tpu.memory_space<vmem>>, vector<24x1xf32>
    %cst_12 = arith.constant dense<0.000000e+00> : vector<24x128xf32>
    %15 = tpu.matmul %13, %12, %cst_12 {dimension_numbers = #tpu.dot_dimension_numbers<[1], [0], [0], [1], [0, 0, 1, 1], [], []>} : vector<24x24xf32>, vector<24x128xf32>, vector<24x128xf32> -> vector<24x128xf32>
    %16 = vector.broadcast %14 : vector<24x1xf32> to vector<24x128xf32>
    %17 = arith.addf %15, %16 : vector<24x128xf32>
    %18 = math.tanh %17 : vector<24x128xf32>
    %c72 = arith.constant 72 : index
    %c0_13 = arith.constant 0 : index
    %19 = vector.load %arg2[%c72, %c0_13] : memref<192x24xf32, #tpu.memory_space<vmem>>, vector<24x24xf32>
    %c72_14 = arith.constant 72 : index
    %c0_15 = arith.constant 0 : index
    %20 = vector.load %arg3[%c72_14, %c0_15] : memref<192x1xf32, #tpu.memory_space<vmem>>, vector<24x1xf32>
    %cst_16 = arith.constant dense<0.000000e+00> : vector<24x128xf32>
    %21 = tpu.matmul %19, %18, %cst_16 {dimension_numbers = #tpu.dot_dimension_numbers<[1], [0], [0], [1], [0, 0, 1, 1], [], []>} : vector<24x24xf32>, vector<24x128xf32>, vector<24x128xf32> -> vector<24x128xf32>
    %22 = vector.broadcast %20 : vector<24x1xf32> to vector<24x128xf32>
    %23 = arith.addf %21, %22 : vector<24x128xf32>
    %c96 = arith.constant 96 : index
    %c0_17 = arith.constant 0 : index
    %24 = vector.load %arg2[%c96, %c0_17] : memref<192x24xf32, #tpu.memory_space<vmem>>, vector<24x24xf32>
    %c96_18 = arith.constant 96 : index
    %c0_19 = arith.constant 0 : index
    %25 = vector.load %arg3[%c96_18, %c0_19] : memref<192x1xf32, #tpu.memory_space<vmem>>, vector<24x1xf32>
    %cst_20 = arith.constant dense<0.000000e+00> : vector<24x128xf32>
    %26 = tpu.matmul %24, %23, %cst_20 {dimension_numbers = #tpu.dot_dimension_numbers<[1], [0], [0], [1], [0, 0, 1, 1], [], []>} : vector<24x24xf32>, vector<24x128xf32>, vector<24x128xf32> -> vector<24x128xf32>
    %27 = vector.broadcast %25 : vector<24x1xf32> to vector<24x128xf32>
    %28 = arith.addf %26, %27 : vector<24x128xf32>
    %29 = math.tanh %28 : vector<24x128xf32>
    %c120 = arith.constant 120 : index
    %c0_21 = arith.constant 0 : index
    %30 = vector.load %arg2[%c120, %c0_21] : memref<192x24xf32, #tpu.memory_space<vmem>>, vector<24x24xf32>
    %c120_22 = arith.constant 120 : index
    %c0_23 = arith.constant 0 : index
    %31 = vector.load %arg3[%c120_22, %c0_23] : memref<192x1xf32, #tpu.memory_space<vmem>>, vector<24x1xf32>
    %cst_24 = arith.constant dense<0.000000e+00> : vector<24x128xf32>
    %32 = tpu.matmul %30, %29, %cst_24 {dimension_numbers = #tpu.dot_dimension_numbers<[1], [0], [0], [1], [0, 0, 1, 1], [], []>} : vector<24x24xf32>, vector<24x128xf32>, vector<24x128xf32> -> vector<24x128xf32>
    %33 = vector.broadcast %31 : vector<24x1xf32> to vector<24x128xf32>
    %34 = arith.addf %32, %33 : vector<24x128xf32>
    %35 = math.tanh %34 : vector<24x128xf32>
    %c144 = arith.constant 144 : index
    %c0_25 = arith.constant 0 : index
    %36 = vector.load %arg2[%c144, %c0_25] : memref<192x24xf32, #tpu.memory_space<vmem>>, vector<24x24xf32>
    %c144_26 = arith.constant 144 : index
    %c0_27 = arith.constant 0 : index
    %37 = vector.load %arg3[%c144_26, %c0_27] : memref<192x1xf32, #tpu.memory_space<vmem>>, vector<24x1xf32>
    %cst_28 = arith.constant dense<0.000000e+00> : vector<24x128xf32>
    %38 = tpu.matmul %36, %35, %cst_28 {dimension_numbers = #tpu.dot_dimension_numbers<[1], [0], [0], [1], [0, 0, 1, 1], [], []>} : vector<24x24xf32>, vector<24x128xf32>, vector<24x128xf32> -> vector<24x128xf32>
    %39 = vector.broadcast %37 : vector<24x1xf32> to vector<24x128xf32>
    %40 = arith.addf %38, %39 : vector<24x128xf32>
    %41 = math.tanh %40 : vector<24x128xf32>
    %c168 = arith.constant 168 : index
    %c0_29 = arith.constant 0 : index
    %42 = vector.load %arg2[%c168, %c0_29] : memref<192x24xf32, #tpu.memory_space<vmem>>, vector<24x24xf32>
    %c168_30 = arith.constant 168 : index
    %c0_31 = arith.constant 0 : index
    %43 = vector.load %arg3[%c168_30, %c0_31] : memref<192x1xf32, #tpu.memory_space<vmem>>, vector<24x1xf32>
    %cst_32 = arith.constant dense<0.000000e+00> : vector<24x128xf32>
    %44 = tpu.matmul %42, %41, %cst_32 {dimension_numbers = #tpu.dot_dimension_numbers<[1], [0], [0], [1], [0, 0, 1, 1], [], []>} : vector<24x24xf32>, vector<24x128xf32>, vector<24x128xf32> -> vector<24x128xf32>
    %45 = vector.broadcast %43 : vector<24x1xf32> to vector<24x128xf32>
    %46 = arith.addf %44, %45 : vector<24x128xf32>
    %47 = vector.extract_strided_slice %46 {offsets = [0, 0], sizes = [4, 128], strides = [1, 1]} : vector<24x128xf32> to vector<4x128xf32>
    %cst_33 = arith.constant dense<0xFF800000> : vector<128xf32>
    %48 = vector.multi_reduction <maximumf>, %47, %cst_33 [0] : vector<4x128xf32> to vector<128xf32>
    %49 = vector.shape_cast %48 : vector<128xf32> to vector<1x128xf32>
    %50 = vector.broadcast %49 : vector<1x128xf32> to vector<4x128xf32>
    %51 = arith.subf %47, %50 : vector<4x128xf32>
    %52 = math.exp %51 : vector<4x128xf32>
    %cst_34 = arith.constant dense<0.000000e+00> : vector<128xf32>
    %53 = vector.multi_reduction <add>, %52, %cst_34 [0] : vector<4x128xf32> to vector<128xf32>
    %54 = vector.shape_cast %53 : vector<128xf32> to vector<1x128xf32>
    %55 = vector.broadcast %54 : vector<1x128xf32> to vector<4x128xf32>
    %56 = arith.divf %52, %55 : vector<4x128xf32>
    %c0_35 = arith.constant 0 : index
    %c0_36 = arith.constant 0 : index
    %57 = vector.load %arg4[%c0_35, %c0_36] : memref<32x128xf32, #tpu.memory_space<vmem>>, vector<4x128xf32>
    tpu.vector_store %arg4[%c0_35, %c0_36], %56 {strides = array<i32>} : memref<32x128xf32, #tpu.memory_space<vmem>>, vector<4x128xf32>,
    %58 = vector.extract_strided_slice %46 {offsets = [4, 0], sizes = [4, 128], strides = [1, 1]} : vector<24x128xf32> to vector<4x128xf32>
    %cst_37 = arith.constant dense<0xFF800000> : vector<128xf32>
    %59 = vector.multi_reduction <maximumf>, %58, %cst_37 [0] : vector<4x128xf32> to vector<128xf32>
    %60 = vector.shape_cast %59 : vector<128xf32> to vector<1x128xf32>
    %61 = vector.broadcast %60 : vector<1x128xf32> to vector<4x128xf32>
    %62 = arith.subf %58, %61 : vector<4x128xf32>
    %63 = math.exp %62 : vector<4x128xf32>
    %cst_38 = arith.constant dense<0.000000e+00> : vector<128xf32>
    %64 = vector.multi_reduction <add>, %63, %cst_38 [0] : vector<4x128xf32> to vector<128xf32>
    %65 = vector.shape_cast %64 : vector<128xf32> to vector<1x128xf32>
    %66 = vector.broadcast %65 : vector<1x128xf32> to vector<4x128xf32>
    %67 = arith.divf %63, %66 : vector<4x128xf32>
    %c4 = arith.constant 4 : index
    %c0_39 = arith.constant 0 : index
    %68 = vector.load %arg4[%c4, %c0_39] : memref<32x128xf32, #tpu.memory_space<vmem>>, vector<4x128xf32>
    tpu.vector_store %arg4[%c4, %c0_39], %67 {strides = array<i32>} : memref<32x128xf32, #tpu.memory_space<vmem>>, vector<4x128xf32>,
    %69 = vector.extract_strided_slice %46 {offsets = [8, 0], sizes = [4, 128], strides = [1, 1]} : vector<24x128xf32> to vector<4x128xf32>
    %cst_40 = arith.constant dense<0xFF800000> : vector<128xf32>
    %70 = vector.multi_reduction <maximumf>, %69, %cst_40 [0] : vector<4x128xf32> to vector<128xf32>
    %71 = vector.shape_cast %70 : vector<128xf32> to vector<1x128xf32>
    %72 = vector.broadcast %71 : vector<1x128xf32> to vector<4x128xf32>
    %73 = arith.subf %69, %72 : vector<4x128xf32>
    %74 = math.exp %73 : vector<4x128xf32>
    %cst_41 = arith.constant dense<0.000000e+00> : vector<128xf32>
    %75 = vector.multi_reduction <add>, %74, %cst_41 [0] : vector<4x128xf32> to vector<128xf32>
    %76 = vector.shape_cast %75 : vector<128xf32> to vector<1x128xf32>
    %77 = vector.broadcast %76 : vector<1x128xf32> to vector<4x128xf32>
    %78 = arith.divf %74, %77 : vector<4x128xf32>
    %c8 = arith.constant 8 : index
    %c0_42 = arith.constant 0 : index
    %79 = vector.load %arg4[%c8, %c0_42] : memref<32x128xf32, #tpu.memory_space<vmem>>, vector<4x128xf32>
    tpu.vector_store %arg4[%c8, %c0_42], %78 {strides = array<i32>} : memref<32x128xf32, #tpu.memory_space<vmem>>, vector<4x128xf32>,
    %80 = vector.extract_strided_slice %46 {offsets = [12, 0], sizes = [4, 128], strides = [1, 1]} : vector<24x128xf32> to vector<4x128xf32>
    %cst_43 = arith.constant dense<0xFF800000> : vector<128xf32>
    %81 = vector.multi_reduction <maximumf>, %80, %cst_43 [0] : vector<4x128xf32> to vector<128xf32>
    %82 = vector.shape_cast %81 : vector<128xf32> to vector<1x128xf32>
    %83 = vector.broadcast %82 : vector<1x128xf32> to vector<4x128xf32>
    %84 = arith.subf %80, %83 : vector<4x128xf32>
    %85 = math.exp %84 : vector<4x128xf32>
    %cst_44 = arith.constant dense<0.000000e+00> : vector<128xf32>
    %86 = vector.multi_reduction <add>, %85, %cst_44 [0] : vector<4x128xf32> to vector<128xf32>
    %87 = vector.shape_cast %86 : vector<128xf32> to vector<1x128xf32>
    %88 = vector.broadcast %87 : vector<1x128xf32> to vector<4x128xf32>
    %89 = arith.divf %85, %88 : vector<4x128xf32>
    %c12 = arith.constant 12 : index
    %c0_45 = arith.constant 0 : index
    %90 = vector.load %arg4[%c12, %c0_45] : memref<32x128xf32, #tpu.memory_space<vmem>>, vector<4x128xf32>
    tpu.vector_store %arg4[%c12, %c0_45], %89 {strides = array<i32>} : memref<32x128xf32, #tpu.memory_space<vmem>>, vector<4x128xf32>,
    %91 = vector.extract_strided_slice %23 {offsets = [0, 0], sizes = [16, 128], strides = [1, 1]} : vector<24x128xf32> to vector<16x128xf32>
    %c16 = arith.constant 16 : index
    %c0_46 = arith.constant 0 : index
    %92 = vector.load %arg4[%c16, %c0_46] : memref<32x128xf32, #tpu.memory_space<vmem>>, vector<16x128xf32>
    tpu.vector_store %arg4[%c16, %c0_46], %91 {strides = array<i32>} : memref<32x128xf32, #tpu.memory_space<vmem>>, vector<16x128xf32>,
    return
  }
  func.func @transform_0(%arg0: i32) -> (i32, i32) {
    %c0_i32 = arith.constant 0 : i32
    %c0_i32_0 = arith.constant 0 : i32
    return %c0_i32, %arg0 : i32, i32
  }
  func.func @transform_1(%arg0: i32) -> (i32, i32) {
    %c0_i32 = arith.constant 0 : i32
    %c0_i32_0 = arith.constant 0 : i32
    %c0_i32_1 = arith.constant 0 : i32
    return %c0_i32, %c0_i32_0 : i32, i32
  }
  func.func @transform_2(%arg0: i32) -> (i32, i32) {
    %c0_i32 = arith.constant 0 : i32
    %c0_i32_0 = arith.constant 0 : i32
    %c0_i32_1 = arith.constant 0 : i32
    return %c0_i32, %c0_i32_0 : i32, i32
  }
  func.func @transform_3(%arg0: i32) -> (i32, i32) {
    %c0_i32 = arith.constant 0 : i32
    %c0_i32_0 = arith.constant 0 : i32
    return %c0_i32, %arg0 : i32, i32
  }
}

</mosaic_0001>

<llo_original>
// kernel: _vae_forward.1
$region0: #{_vae_forward.1}
  #allocation0 [shape = 'u32[]', space=smem, size = 0x4, offset = 0x4, fixed_abs, tag = 'smem constant byte address 0x4 - core index']
  #allocation1 [shape = 'u32[72,128]{1,0:T(1,128)}', space=vmem, size = 0x9000, scoped, tag = 'internal scratch']
  %s0 = inlined_call_operand.vmem [shape: f32[24,128], index: 0, kind: input, shape index: {}]
  %s1 = inlined_call_operand.vmem [shape: f32[192,24], index: 1, kind: input, shape index: {}]
  %s2 = inlined_call_operand.vmem [shape: f32[192,1], index: 2, kind: input, shape index: {}]
  %s3 = inlined_call_operand.vmem [shape: f32[32,128], index: 3, kind: output, shape index: {}]
  %s4 = sld [smem:[#allocation0]]
  $region22: #{_vae_forward.1} parent=0
    _
  %s6 = ssub.s32 1, %s4
  %s7 = scalar_select 0, %s6, %s4
  // Predicated region
  $region2: #{_vae_forward.1} parent=0 // pred_check
    _
  $region3: #{_vae_forward.1} parent=0 // pred_check_branch
    %9 = sbr.rel (0) target = $region5
  $region4: #{_vae_forward.1} parent=0 // pred_region
    _
  $region5: #{_vae_forward.1} parent=0 // pred_fallthru
    _
  // Predicated region
  $region6: #{_vae_forward.1} parent=0 // pred_check
    _
  $region7: #{_vae_forward.1} parent=0 // pred_check_branch
    %11 = sbr.rel (0) target = $region9
  $region8: #{_vae_forward.1} parent=0 // pred_region
    _
  $region9: #{_vae_forward.1} parent=0 // pred_fallthru
    _
  // Predicated region
  $region10: #{_vae_forward.1} parent=0 // pred_check
    _
  $region11: #{_vae_forward.1} parent=0 // pred_check_branch
    %13 = sbr.rel (0) target = $region13
  $region12: #{_vae_forward.1} parent=0 // pred_region
    _
  $region13: #{_vae_forward.1} parent=0 // pred_fallthru
    _
  %v14 = vld [vmem:[%s0] sm:$0xff]
  %v15 = vld [vmem:[%s0 + $0x8] sm:$0xff]
  %v16 = vld [vmem:[%s0 + $0x10] sm:$0xff]
  %v17 = vld [vmem:[%s1] sm:$0xff]
  %v18 = vld [vmem:[%s1 + $0x8] sm:$0xff]
  %v19 = vld [vmem:[%s1 + $0x10] sm:$0xff]
  %v20 = vld [vmem:[%s2] sm:$0xff]
  %v21 = vld [vmem:[%s2 + $0x8] sm:$0xff]
  %v22 = vld [vmem:[%s2 + $0x10] sm:$0xff]
  %24 = vset.pattern.permute.xlu0 0
  %25 = vperm.xlu0 %24, %v20
  %v26 = vpop.permute.xlu0 %25
  %29 = vset.pattern.permute.xlu0 0
  %30 = vperm.xlu0 %29, %v21
  %v31 = vpop.permute.xlu0 %30
  %34 = vset.pattern.permute.xlu0 0
  %35 = vperm.xlu0 %34, %v22
  %v36 = vpop.permute.xlu0 %35
  %vm38 = vcmask 195584
  %v40 = vsel %vm38, %v17, 0
  %v43 = vsel %vm38, %v18, 0
  %v46 = vsel %vm38, %v19, 0
  %48 = vmatpush.msra.mxu0 0.0
  %49 = vmatpush.msra.mxu0 0.0
  %50 = vmatpush.msra.mxu0 0.0
  %51 = vmatpush.msra.mxu0 0.0
  %52 = vmatpush.msra.mxu0 0.0
  %53 = vmatpush.msra.mxu0 0.0
  %54 = vmatpush.msra.mxu0 0.0
  %55 = vmatpush.msra.mxu0 0.0
  %56 = vmatpush.msra.mxu0 0.0
  %57 = vmatpush.msra.mxu0 0.0
  %58 = vmatpush.msra.mxu0 0.0
  %59 = vmatpush.msra.mxu0 0.0
  %60 = vmatpush.msra.mxu0 0.0
  %61 = vmatpush.msra.mxu0 %v16
  %62 = vmatpush.msra.mxu0 %v15
  %63 = vmatpush.msra.mxu0 %v14
  %64 = vmatmul.f32.gmra.mxu0 %v40
  %v65 = vpop.f32.mrf.mxu0
  %v66 = vadd.f32 %v26, %v65
  %67 = vmatmul.f32.gmra.mxu0 %v43
  %v68 = vpop.f32.mrf.mxu0
  %v69 = vadd.f32 %v31, %v68
  %70 = vmatmul.f32.gmra.mxu0 %v46
  %v71 = vpop.f32.mrf.mxu0
  %v72 = vadd.f32 %v36, %v71
  %73 = vdwg.mxu0
  %v74 = vtanh.pop %v66
  %v75 = vtanh.pop %v69
  %v76 = vtanh.pop %v72
  %v77 = vld [vmem:[%s1 + $0x18] sm:$0xff]
  %v78 = vld [vmem:[%s1 + $0x20] sm:$0xff]
  %v79 = vld [vmem:[%s1 + $0x28] sm:$0xff]
  %v80 = vld [vmem:[%s2 + $0x18] sm:$0xff]
  %v81 = vld [vmem:[%s2 + $0x20] sm:$0xff]
  %v82 = vld [vmem:[%s2 + $0x28] sm:$0xff]
  %84 = vset.pattern.permute.xlu0 0
  %85 = vperm.xlu0 %84, %v80
  %v86 = vpop.permute.xlu0 %85
  %89 = vset.pattern.permute.xlu0 0
  %90 = vperm.xlu0 %89, %v81
  %v91 = vpop.permute.xlu0 %90
  %94 = vset.pattern.permute.xlu0 0
  %95 = vperm.xlu0 %94, %v82
  %v96 = vpop.permute.xlu0 %95
  %v99 = vsel %vm38, %v77, 0
  %v102 = vsel %vm38, %v78, 0
  %v105 = vsel %vm38, %v79, 0
  %107 = vmatpush.msra.mxu0 0.0
  %108 = vmatpush.msra.mxu0 0.0
  %109 = vmatpush.msra.mxu0 0.0
  %110 = vmatpush.msra.mxu0 0.0
  %111 = vmatpush.msra.mxu0 0.0
  %112 = vmatpush.msra.mxu0 0.0
  %113 = vmatpush.msra.mxu0 0.0
  %114 = vmatpush.msra.mxu0 0.0
  %115 = vmatpush.msra.mxu0 0.0
  %116 = vmatpush.msra.mxu0 0.0
  %117 = vmatpush.msra.mxu0 0.0
  %118 = vmatpush.msra.mxu0 0.0
  %119 = vmatpush.msra.mxu0 0.0
  %120 = vmatpush.msra.mxu0 %v76
  %121 = vmatpush.msra.mxu0 %v75
  %122 = vmatpush.msra.mxu0 %v74
  %123 = vmatmul.f32.gmra.mxu0 %v99
  %v124 = vpop.f32.mrf.mxu0
  %v125 = vadd.f32 %v86, %v124
  %126 = vmatmul.f32.gmra.mxu0 %v102
  %v127 = vpop.f32.mrf.mxu0
  %v128 = vadd.f32 %v91, %v127
  %129 = vmatmul.f32.gmra.mxu0 %v105
  %v130 = vpop.f32.mrf.mxu0
  %v131 = vadd.f32 %v96, %v130
  %132 = vdwg.mxu0
  %v133 = vtanh.pop %v125
  %v134 = vtanh.pop %v128
  %v135 = vtanh.pop %v131
  %v136 = vld [vmem:[%s1 + $0x30] sm:$0xff]
  %v137 = vld [vmem:[%s1 + $0x38] sm:$0xff]
  %v138 = vld [vmem:[%s1 + $0x40] sm:$0xff]
  %v139 = vld [vmem:[%s2 + $0x30] sm:$0xff]
  %v140 = vld [vmem:[%s2 + $0x38] sm:$0xff]
  %v141 = vld [vmem:[%s2 + $0x40] sm:$0xff]
  %143 = vset.pattern.permute.xlu0 0
  %144 = vperm.xlu0 %143, %v139
  %v145 = vpop.permute.xlu0 %144
  %148 = vset.pattern.permute.xlu0 0
  %149 = vperm.xlu0 %148, %v140
  %v150 = vpop.permute.xlu0 %149
  %153 = vset.pattern.permute.xlu0 0
  %154 = vperm.xlu0 %153, %v141
  %v155 = vpop.permute.xlu0 %154
  %v158 = vsel %vm38, %v136, 0
  %v161 = vsel %vm38, %v137, 0
  %v164 = vsel %vm38, %v138, 0
  %166 = vmatpush.msra.mxu0 0.0
  %167 = vmatpush.msra.mxu0 0.0
  %168 = vmatpush.msra.mxu0 0.0
  %169 = vmatpush.msra.mxu0 0.0
  %170 = vmatpush.msra.mxu0 0.0
  %171 = vmatpush.msra.mxu0 0.0
  %172 = vmatpush.msra.mxu0 0.0
  %173 = vmatpush.msra.mxu0 0.0
  %174 = vmatpush.msra.mxu0 0.0
  %175 = vmatpush.msra.mxu0 0.0
  %176 = vmatpush.msra.mxu0 0.0
  %177 = vmatpush.msra.mxu0 0.0
  %178 = vmatpush.msra.mxu0 0.0
  %179 = vmatpush.msra.mxu0 %v135
  %180 = vmatpush.msra.mxu0 %v134
  %181 = vmatpush.msra.mxu0 %v133
  %182 = vmatmul.f32.gmra.mxu0 %v158
  %v183 = vpop.f32.mrf.mxu0
  %v184 = vadd.f32 %v145, %v183
  %185 = vmatmul.f32.gmra.mxu0 %v161
  %v186 = vpop.f32.mrf.mxu0
  %v187 = vadd.f32 %v150, %v186
  %188 = vmatmul.f32.gmra.mxu0 %v164
  %v189 = vpop.f32.mrf.mxu0
  %v190 = vadd.f32 %v155, %v189
  %191 = vdwg.mxu0
  %v192 = vtanh.pop %v184
  %v193 = vtanh.pop %v187
  %v194 = vtanh.pop %v190
  %v195 = vld [vmem:[%s1 + $0x48] sm:$0xff]
  %v196 = vld [vmem:[%s1 + $0x50] sm:$0xff]
  %v197 = vld [vmem:[%s1 + $0x58] sm:$0xff]
  %v198 = vld [vmem:[%s2 + $0x48] sm:$0xff]
  %v199 = vld [vmem:[%s2 + $0x50] sm:$0xff]
  %v200 = vld [vmem:[%s2 + $0x58] sm:$0xff]
  %202 = vset.pattern.permute.xlu0 0
  %203 = vperm.xlu0 %202, %v198
  %v204 = vpop.permute.xlu0 %203
  %207 = vset.pattern.permute.xlu0 0
  %208 = vperm.xlu0 %207, %v199
  %v209 = vpop.permute.xlu0 %208
  %212 = vset.pattern.permute.xlu0 0
  %213 = vperm.xlu0 %212, %v200
  %v214 = vpop.permute.xlu0 %213
  %v217 = vsel %vm38, %v195, 0
  %v220 = vsel %vm38, %v196, 0
  %v223 = vsel %vm38, %v197, 0
  %225 = vmatpush.msra.mxu0 0.0
  %226 = vmatpush.msra.mxu0 0.0
  %227 = vmatpush.msra.mxu0 0.0
  %228 = vmatpush.msra.mxu0 0.0
  %229 = vmatpush.msra.mxu0 0.0
  %230 = vmatpush.msra.mxu0 0.0
  %231 = vmatpush.msra.mxu0 0.0
  %232 = vmatpush.msra.mxu0 0.0
  %233 = vmatpush.msra.mxu0 0.0
  %234 = vmatpush.msra.mxu0 0.0
  %235 = vmatpush.msra.mxu0 0.0
  %236 = vmatpush.msra.mxu0 0.0
  %237 = vmatpush.msra.mxu0 0.0
  %238 = vmatpush.msra.mxu0 %v194
  %239 = vmatpush.msra.mxu0 %v193
  %240 = vmatpush.msra.mxu0 %v192
  %241 = vmatmul.f32.gmra.mxu0 %v217
  %v242 = vpop.f32.mrf.mxu0
  %v243 = vadd.f32 %v204, %v242
  %244 = vmatmul.f32.gmra.mxu0 %v220
  %v245 = vpop.f32.mrf.mxu0
  %v246 = vadd.f32 %v209, %v245
  %247 = vmatmul.f32.gmra.mxu0 %v223
  %v248 = vpop.f32.mrf.mxu0
  %v249 = vadd.f32 %v214, %v248
  %250 = vdwg.mxu0
  %v251 = vld [vmem:[%s1 + $0x60] sm:$0xff]
  %v252 = vld [vmem:[%s1 + $0x68] sm:$0xff]
  %v253 = vld [vmem:[%s1 + $0x70] sm:$0xff]
  %v254 = vld [vmem:[%s2 + $0x60] sm:$0xff]
  %v255 = vld [vmem:[%s2 + $0x68] sm:$0xff]
  %v256 = vld [vmem:[%s2 + $0x70] sm:$0xff]
  %258 = vset.pattern.permute.xlu0 0
  %259 = vperm.xlu0 %258, %v254
  %v260 = vpop.permute.xlu0 %259
  %263 = vset.pattern.permute.xlu0 0
  %264 = vperm.xlu0 %263, %v255
  %v265 = vpop.permute.xlu0 %264
  %268 = vset.pattern.permute.xlu0 0
  %269 = vperm.xlu0 %268, %v256
  %v270 = vpop.permute.xlu0 %269
  %v273 = vsel %vm38, %v251, 0
  %v276 = vsel %vm38, %v252, 0
  %v279 = vsel %vm38, %v253, 0
  %281 = vmatpush.msra.mxu0 0.0
  %282 = vmatpush.msra.mxu0 0.0
  %283 = vmatpush.msra.mxu0 0.0
  %284 = vmatpush.msra.mxu0 0.0
  %285 = vmatpush.msra.mxu0 0.0
  %286 = vmatpush.msra.mxu0 0.0
  %287 = vmatpush.msra.mxu0 0.0
  %288 = vmatpush.msra.mxu0 0.0
  %289 = vmatpush.msra.mxu0 0.0
  %290 = vmatpush.msra.mxu0 0.0
  %291 = vmatpush.msra.mxu0 0.0
  %292 = vmatpush.msra.mxu0 0.0
  %293 = vmatpush.msra.mxu0 0.0
  %294 = vmatpush.msra.mxu0 %v249
  %295 = vmatpush.msra.mxu0 %v246
  %296 = vmatpush.msra.mxu0 %v243
  %297 = vmatmul.f32.gmra.mxu0 %v273
  %v298 = vpop.f32.mrf.mxu0
  %v299 = vadd.f32 %v260, %v298
  %300 = vmatmul.f32.gmra.mxu0 %v276
  %v301 = vpop.f32.mrf.mxu0
  %v302 = vadd.f32 %v265, %v301
  %303 = vmatmul.f32.gmra.mxu0 %v279
  %v304 = vpop.f32.mrf.mxu0
  %v305 = vadd.f32 %v270, %v304
  %306 = vdwg.mxu0
  %v307 = vtanh.pop %v299
  %v308 = vtanh.pop %v302
  %v309 = vtanh.pop %v305
  %v310 = vld [vmem:[%s1 + $0x78] sm:$0xff]
  %v311 = vld [vmem:[%s1 + $0x80] sm:$0xff]
  %v312 = vld [vmem:[%s1 + $0x88] sm:$0xff]
  %v313 = vld [vmem:[%s2 + $0x78] sm:$0xff]
  %v314 = vld [vmem:[%s2 + $0x80] sm:$0xff]
  %v315 = vld [vmem:[%s2 + $0x88] sm:$0xff]
  %317 = vset.pattern.permute.xlu0 0
  %318 = vperm.xlu0 %317, %v313
  %v319 = vpop.permute.xlu0 %318
  %322 = vset.pattern.permute.xlu0 0
  %323 = vperm.xlu0 %322, %v314
  %v324 = vpop.permute.xlu0 %323
  %327 = vset.pattern.permute.xlu0 0
  %328 = vperm.xlu0 %327, %v315
  %v329 = vpop.permute.xlu0 %328
  %v332 = vsel %vm38, %v310, 0
  %v335 = vsel %vm38, %v311, 0
  %v338 = vsel %vm38, %v312, 0
  %340 = vmatpush.msra.mxu0 0.0
  %341 = vmatpush.msra.mxu0 0.0
  %342 = vmatpush.msra.mxu0 0.0
  %343 = vmatpush.msra.mxu0 0.0
  %344 = vmatpush.msra.mxu0 0.0
  %345 = vmatpush.msra.mxu0 0.0
  %346 = vmatpush.msra.mxu0 0.0
  %347 = vmatpush.msra.mxu0 0.0
  %348 = vmatpush.msra.mxu0 0.0
  %349 = vmatpush.msra.mxu0 0.0
  %350 = vmatpush.msra.mxu0 0.0
  %351 = vmatpush.msra.mxu0 0.0
  %352 = vmatpush.msra.mxu0 0.0
  %353 = vmatpush.msra.mxu0 %v309
  %354 = vmatpush.msra.mxu0 %v308
  %355 = vmatpush.msra.mxu0 %v307
  %356 = vmatmul.f32.gmra.mxu0 %v332
  %v357 = vpop.f32.mrf.mxu0
  %v358 = vadd.f32 %v319, %v357
  %359 = vmatmul.f32.gmra.mxu0 %v335
  %v360 = vpop.f32.mrf.mxu0
  %v361 = vadd.f32 %v324, %v360
  %362 = vmatmul.f32.gmra.mxu0 %v338
  %v363 = vpop.f32.mrf.mxu0
  %v364 = vadd.f32 %v329, %v363
  %365 = vdwg.mxu0
  %v366 = vtanh.pop %v358
  %v367 = vtanh.pop %v361
  %v368 = vtanh.pop %v364
  %v369 = vld [vmem:[%s1 + $0x90] sm:$0xff]
  %v370 = vld [vmem:[%s1 + $0x98] sm:$0xff]
  %v371 = vld [vmem:[%s1 + $0xa0] sm:$0xff]
  %v372 = vld [vmem:[%s2 + $0x90] sm:$0xff]
  %v373 = vld [vmem:[%s2 + $0x98] sm:$0xff]
  %v374 = vld [vmem:[%s2 + $0xa0] sm:$0xff]
  %376 = vset.pattern.permute.xlu0 0
  %377 = vperm.xlu0 %376, %v372
  %v378 = vpop.permute.xlu0 %377
  %381 = vset.pattern.permute.xlu0 0
  %382 = vperm.xlu0 %381, %v373
  %v383 = vpop.permute.xlu0 %382
  %386 = vset.pattern.permute.xlu0 0
  %387 = vperm.xlu0 %386, %v374
  %v388 = vpop.permute.xlu0 %387
  %v391 = vsel %vm38, %v369, 0
  %v394 = vsel %vm38, %v370, 0
  %v397 = vsel %vm38, %v371, 0
  %399 = vmatpush.msra.mxu0 0.0
  %400 = vmatpush.msra.mxu0 0.0
  %401 = vmatpush.msra.mxu0 0.0
  %402 = vmatpush.msra.mxu0 0.0
  %403 = vmatpush.msra.mxu0 0.0
  %404 = vmatpush.msra.mxu0 0.0
  %405 = vmatpush.msra.mxu0 0.0
  %406 = vmatpush.msra.mxu0 0.0
  %407 = vmatpush.msra.mxu0 0.0
  %408 = vmatpush.msra.mxu0 0.0
  %409 = vmatpush.msra.mxu0 0.0
  %410 = vmatpush.msra.mxu0 0.0
  %411 = vmatpush.msra.mxu0 0.0
  %412 = vmatpush.msra.mxu0 %v368
  %413 = vmatpush.msra.mxu0 %v367
  %414 = vmatpush.msra.mxu0 %v366
  %415 = vmatmul.f32.gmra.mxu0 %v391
  %v416 = vpop.f32.mrf.mxu0
  %v417 = vadd.f32 %v378, %v416
  %418 = vmatmul.f32.gmra.mxu0 %v394
  %v419 = vpop.f32.mrf.mxu0
  %v420 = vadd.f32 %v383, %v419
  %421 = vmatmul.f32.gmra.mxu0 %v397
  %v422 = vpop.f32.mrf.mxu0
  %v423 = vadd.f32 %v388, %v422
  %424 = vdwg.mxu0
  %v425 = vtanh.pop %v417
  %v426 = vtanh.pop %v420
  %v427 = vtanh.pop %v423
  %v428 = vld [vmem:[%s1 + $0xa8] sm:$0xff]
  %v429 = vld [vmem:[%s1 + $0xb0] sm:$0xff]
  %v430 = vld [vmem:[%s1 + $0xb8] sm:$0xff]
  %v431 = vld [vmem:[%s2 + $0xa8] sm:$0xff]
  %v432 = vld [vmem:[%s2 + $0xb0] sm:$0xff]
  %v433 = vld [vmem:[%s2 + $0xb8] sm:$0xff]
  %435 = vset.pattern.permute.xlu0 0
  %436 = vperm.xlu0 %435, %v431
  %v437 = vpop.permute.xlu0 %436
  %440 = vset.pattern.permute.xlu0 0
  %441 = vperm.xlu0 %440, %v432
  %v442 = vpop.permute.xlu0 %441
  %445 = vset.pattern.permute.xlu0 0
  %446 = vperm.xlu0 %445, %v433
  %v447 = vpop.permute.xlu0 %446
  %v449 = vsel %vm38, %v428, 0
  %v452 = vsel %vm38, %v429, 0
  %v455 = vsel %vm38, %v430, 0
  %457 = vmatpush.msra.mxu0 0.0
  %458 = vmatpush.msra.mxu0 0.0
  %459 = vmatpush.msra.mxu0 0.0
  %460 = vmatpush.msra.mxu0 0.0
  %461 = vmatpush.msra.mxu0 0.0
  %462 = vmatpush.msra.mxu0 0.0
  %463 = vmatpush.msra.mxu0 0.0
  %464 = vmatpush.msra.mxu0 0.0
  %465 = vmatpush.msra.mxu0 0.0
  %466 = vmatpush.msra.mxu0 0.0
  %467 = vmatpush.msra.mxu0 0.0
  %468 = vmatpush.msra.mxu0 0.0
  %469 = vmatpush.msra.mxu0 0.0
  %470 = vmatpush.msra.mxu0 %v427
  %471 = vmatpush.msra.mxu0 %v426
  %472 = vmatpush.msra.mxu0 %v425
  %473 = vmatmul.f32.gmra.mxu0 %v449
  %v474 = vpop.f32.mrf.mxu0
  %v475 = vadd.f32 %v437, %v474
  %476 = vmatmul.f32.gmra.mxu0 %v452
  %v477 = vpop.f32.mrf.mxu0
  %v478 = vadd.f32 %v442, %v477
  %479 = vmatmul.f32.gmra.mxu0 %v455
  %v480 = vpop.f32.mrf.mxu0
  %481 = vdwg.mxu0
  %vm482 = vcmask 1043456
  %v483 = vsel %vm482, %v475, -inf
  %v484 = vrot.slane %v483, 4
  %v485 = vmax.f32 %v483, %v484
  %v486 = vrot.slane %v485, 2
  %v487 = vmax.f32 %v485, %v486
  %v488 = vrot.slane %v487, 1
  %v489 = vmax.f32 %v487, %v488
  %v490 = vsub.f32 %v475, %v489
  %v491 = vmul.f32 %v490, 1.442695
  %v492 = vpow.pop %v491
  %v493 = vsel %vm482, %v492, 0.0
  %v494 = vrot.slane %v493, 4
  %v495 = vadd.f32 %v493, %v494
  %v496 = vrot.slane %v495, 2
  %v497 = vadd.f32 %v495, %v496
  %v498 = vrot.slane %v497, 1
  %v499 = vadd.f32 %v497, %v498
  %v500 = vrcp.pop %v499
  %v501 = vmul.f32 %v499, %v500
  %v502 = vsub.f32 1.0, %v501
  %v503 = vmul.f32 %v500, %v502
  %v504 = vadd.f32 %v500, %v503
  %vm505 = vweird.f32 %v499
  %vm506 = vweird.f32 %v500
  %vm507 = vmor %vm505, %vm506
  %v508 = vsel %vm507, %v500, %v504
  %v509 = vand.u32 2147483647, %v499
  %vm510 = vcmp.eq.f32.partialorder %v509, 8.507059e+37
  %v511 = vand.u32 %v499, 2147483648
  %v512 = vor.u32 1.1754944e-38, %v511
  %v513 = vsel %vm510, %v512, %v508
  %v514 = vmul.f32 %v492, %v513
  %515 = vst [vmem:[%s3] sm:$0xf] %v514
  %vm516 = vcmask 1047556
  %v517 = vsel %vm516, %v475, -inf
  %v518 = vrot.slane %v517, 4
  %v519 = vmax.f32 %v517, %v518
  %v520 = vrot.slane %v519, 2
  %v521 = vmax.f32 %v519, %v520
  %v522 = vrot.slane %v521, 1
  %v523 = vmax.f32 %v521, %v522
  %v524 = vsub.f32 %v475, %v523
  %v525 = vmul.f32 %v524, 1.442695
  %v526 = vpow.pop %v525
  %v528 = vrot.slane %v526, 4
  %v530 = vsel %vm482, %v528, 0.0
  %v531 = vrot.slane %v530, 4
  %v532 = vadd.f32 %v530, %v531
  %v533 = vrot.slane %v532, 2
  %v534 = vadd.f32 %v532, %v533
  %v535 = vrot.slane %v534, 1
  %v536 = vadd.f32 %v534, %v535
  %v537 = vrcp.pop %v536
  %v538 = vmul.f32 %v536, %v537
  %v539 = vsub.f32 1.0, %v538
  %v540 = vmul.f32 %v537, %v539
  %v541 = vadd.f32 %v537, %v540
  %vm542 = vweird.f32 %v536
  %vm543 = vweird.f32 %v537
  %vm544 = vmor %vm542, %vm543
  %v545 = vsel %vm544, %v537, %v541
  %v546 = vand.u32 2147483647, %v536
  %vm547 = vcmp.eq.f32.partialorder %v546, 8.507059e+37
  %v548 = vand.u32 %v536, 2147483648
  %v549 = vor.u32 1.1754944e-38, %v548
  %v550 = vsel %vm547, %v549, %v545
  %v551 = vmul.f32 %v526, %v550
  %552 = vst [vmem:[%s3] sm:$0xf0] %v551
  %v553 = vsel %vm482, %v478, -inf
  %v554 = vrot.slane %v553, 4
  %v555 = vmax.f32 %v553, %v554
  %v556 = vrot.slane %v555, 2
  %v557 = vmax.f32 %v555, %v556
  %v558 = vrot.slane %v557, 1
  %v559 = vmax.f32 %v557, %v558
  %v560 = vsub.f32 %v478, %v559
  %v561 = vmul.f32 %v560, 1.442695
  %v562 = vpow.pop %v561
  %v563 = vsel %vm482, %v562, 0.0
  %v564 = vrot.slane %v563, 4
  %v565 = vadd.f32 %v563, %v564
  %v566 = vrot.slane %v565, 2
  %v567 = vadd.f32 %v565, %v566
  %v568 = vrot.slane %v567, 1
  %v569 = vadd.f32 %v567, %v568
  %v570 = vrcp.pop %v569
  %v571 = vmul.f32 %v569, %v570
  %v572 = vsub.f32 1.0, %v571
  %v573 = vmul.f32 %v570, %v572
  %v574 = vadd.f32 %v570, %v573
  %vm575 = vweird.f32 %v569
  %vm576 = vweird.f32 %v570
  %vm577 = vmor %vm575, %vm576
  %v578 = vsel %vm577, %v570, %v574
  %v579 = vand.u32 2147483647, %v569
  %vm580 = vcmp.eq.f32.partialorder %v579, 8.507059e+37
  %v581 = vand.u32 %v569, 2147483648
  %v582 = vor.u32 1.1754944e-38, %v581
  %v583 = vsel %vm580, %v582, %v578
  %v584 = vmul.f32 %v562, %v583
  %585 = vst [vmem:[%s3 + $0x8] sm:$0xf] %v584
  %v586 = vsel %vm516, %v478, -inf
  %v587 = vrot.slane %v586, 4
  %v588 = vmax.f32 %v586, %v587
  %v589 = vrot.slane %v588, 2
  %v590 = vmax.f32 %v588, %v589
  %v591 = vrot.slane %v590, 1
  %v592 = vmax.f32 %v590, %v591
  %v593 = vsub.f32 %v478, %v592
  %v594 = vmul.f32 %v593, 1.442695
  %v595 = vpow.pop %v594
  %v597 = vrot.slane %v595, 4
  %v599 = vsel %vm482, %v597, 0.0
  %v600 = vrot.slane %v599, 4
  %v601 = vadd.f32 %v599, %v600
  %v602 = vrot.slane %v601, 2
  %v603 = vadd.f32 %v601, %v602
  %v604 = vrot.slane %v603, 1
  %v605 = vadd.f32 %v603, %v604
  %v606 = vrcp.pop %v605
  %v607 = vmul.f32 %v605, %v606
  %v608 = vsub.f32 1.0, %v607
  %v609 = vmul.f32 %v606, %v608
  %v610 = vadd.f32 %v606, %v609
  %vm611 = vweird.f32 %v605
  %vm612 = vweird.f32 %v606
  %vm613 = vmor %vm611, %vm612
  %v614 = vsel %vm613, %v606, %v610
  %v615 = vand.u32 2147483647, %v605
  %vm616 = vcmp.eq.f32.partialorder %v615, 8.507059e+37
  %v617 = vand.u32 %v605, 2147483648
  %v618 = vor.u32 1.1754944e-38, %v617
  %v619 = vsel %vm616, %v618, %v614
  %v620 = vmul.f32 %v595, %v619
  %621 = vst [vmem:[%s3 + $0x8] sm:$0xf0] %v620
  %622 = vst [vmem:[%s3 + $0x10] sm:$0xff] %v243
  %623 = vst [vmem:[%s3 + $0x18] sm:$0xff] %v246
  // Predicated region
  $region14: #{_vae_forward.1} parent=0 // pred_check
    _
  $region15: #{_vae_forward.1} parent=0 // pred_check_branch
    %625 = sbr.rel (0) target = $region17
  $region16: #{_vae_forward.1} parent=0 // pred_region
    _
  $region17: #{_vae_forward.1} parent=0 // pred_fallthru
    _
  // Predicated region
  $region18: #{_vae_forward.1} parent=0 // pred_check
    _
  $region19: #{_vae_forward.1} parent=0 // pred_check_branch
    %627 = sbr.rel (0) target = $region21
  $region20: #{_vae_forward.1} parent=0 // pred_region
    _
  $region21: #{_vae_forward.1} parent=0 // pred_fallthru
    _

</llo_original>
